<compile_context>
chip_gen: v5e
topology: v5e:2x2
jax: 0.10.0
libtpu: 0.0.40
codegen_flags: <defaults>
</compile_context>

<pallas_src>
import functools
import math

import jax
import jax.numpy as jnp
from jax.experimental import pallas as pl
from jax.experimental.pallas import tpu as pltpu

INPUT_SIZE = 2
OUTPUT_SIZE = 1
HIDDEN_WIDTH = 32
HIDDEN_NLAYERS = 3
MAX_TILE_N = 4096  # batch points (lane axis) per grid step


def _make_inr_kernel(n_coords, n_layers):
    """Fused feature-major MLP kernel: n_coords input features, n_layers Linear layers."""

    def kernel(*refs):
        x_ref = refs[0]                             # [n_coords, tile_n]
        wb_refs = refs[1:1 + 2 * n_layers]          # (w0, b0, w1, b1, ...)
        out_ref = refs[1 + 2 * n_layers]            # [d_out, tile_n]

        x = x_ref[...]                              # [F, T]

        # ---- layer 0: fused "concat" + linear via rank-1 VPU updates ----
        w0 = wb_refs[0][...]                        # [H, F]
        acc = wb_refs[1][...]                       # [H, 1] -> lane broadcast
        for k in range(n_coords):
            acc = acc + w0[:, k:k + 1] * x[k:k + 1, :]   # [H,1]*[1,T] -> [H,T]
        h = jnp.tanh(acc)

        # ---- hidden + output layers (feature-major: lane axis = batch) ----
        for li in range(1, n_layers):
            w = wb_refs[2 * li][...]                # [F_out, F_in]
            b = wb_refs[2 * li + 1][...]            # [F_out, 1]
            z = jnp.dot(w, h, preferred_element_type=jnp.float32) + b
            h = z if li == n_layers - 1 else jnp.tanh(z)

        out_ref[...] = h.astype(out_ref.dtype)

    return kernel


def _tile_layout(n, max_tile):
    """Pick (padded_n, tile_n): tile multiple of 128, >= 2 grid steps when possible."""
    n128 = 128 * (-(-n // 128))
    half = 128 * (-(-(n128 // 128) // 2))           # ~half the batch, multiple of 128
    tile = max(128, min(max_tile, half))
    n_pad = tile * (-(-n128 // tile))
    return n_pad, tile


@functools.partial(jax.jit, static_argnames=("max_tile",))
def inr_forward(params, *args, max_tile=MAX_TILE_N):
    """INR.forward: concat coordinate args on axis=1, run the MLP — fused in Pallas."""
    n = args[0].shape[0]

    # torch.cat(args, axis=1) in feature-major form: [F_total, N].
    xin_fm = jnp.concatenate([a.T.astype(jnp.float32) for a in args], axis=0)
    n_coords = xin_fm.shape[0]

    n_layers = len(params)
    w0 = params[0][0]
    assert w0.shape[1] == n_coords, "total coordinate features must match layer-0 fan_in"
    d_out = params[-1][0].shape[0]

    n_pad, tile_n = _tile_layout(n, max_tile)
    if n_pad != n:
        xin_fm = jnp.pad(xin_fm, ((0, 0), (0, n_pad - n)))

    grid = (n_pad // tile_n,)
    x_spec = pl.BlockSpec((n_coords, tile_n), lambda i: (0, i))

    def full_spec(shape):
        # Weights/biases: constant-index full blocks, kept resident in VMEM.
        return pl.BlockSpec(shape, lambda i: (0, 0))

    wb_flat, wb_specs = [], []
    for (w, b) in params:
        wb_flat += [w, b]
        wb_specs += [full_spec(w.shape), full_spec(b.shape)]

    out = pl.pallas_call(
        _make_inr_kernel(n_coords, n_layers),
        out_shape=jax.ShapeDtypeStruct((d_out, n_pad), jnp.float32),
        grid_spec=pltpu.PrefetchScalarGridSpec(
            num_scalar_prefetch=0,
            grid=grid,
            in_specs=[x_spec] + wb_specs,
            out_specs=pl.BlockSpec((d_out, tile_n), lambda i: (0, i)),
        ),
        compiler_params=pltpu.CompilerParams(
            dimension_semantics=("parallel",)),
    )(xin_fm, *wb_flat)

    # [d_out, n_pad] -> [n, d_out]  (for d_out == 1 this is essentially a reshape)
    return out[:, :n].T


def init_params(key):
    """nn.Linear-style init: W [out,in], b [out,1], U(-1/sqrt(fan_in), +1/sqrt(fan_in))."""
    widths = ([INPUT_SIZE]
              + [HIDDEN_WIDTH for _ in range(HIDDEN_NLAYERS)]
              + [OUTPUT_SIZE])
    params = []
    for i in range(len(widths) - 1):
        fan_in, fan_out = widths[i], widths[i + 1]
        key, kw, kb = jax.random.split(key, 3)
        bound = 1.0 / math.sqrt(fan_in)
        w = jax.random.uniform(kw, (fan_out, fan_in), jnp.float32, -bound, bound)
        b = jax.random.uniform(kb, (fan_out, 1), jnp.float32, -bound, bound)
        params.append((w, b))
    return params


def _reference_forward(params, *args):
    """Plain-JAX reference in the standard [N, F] layout (y = x @ W.T + b)."""
    x = jnp.concatenate(args, axis=1)
    n_layers = len(params)
    for i, (w, b) in enumerate(params):
        x = x @ w.T + b.T
        if i < n_layers - 1:
            x = jnp.tanh(x)
    return x


if __name__ == "__main__":
    key = jax.random.PRNGKey(0)
    key, kx, kt = jax.random.split(key, 3)

    N = 300  # number of collocation points (deliberately NOT a tile multiple)
    # Two coordinate inputs, each [N, 1]; forward concatenates them -> [N, 2].
    x_coord = jax.random.uniform(kx, (N, 1), jnp.float32, -1.0, 1.0)
    t_coord = jax.random.uniform(kt, (N, 1), jnp.float32, 0.0, 1.0)

    params = init_params(jax.random.PRNGKey(0))

    out = inr_forward(params, x_coord, t_coord)
    out = jax.block_until_ready(out)

    ref = _reference_forward(params, x_coord, t_coord)
    assert out.shape == (N, OUTPUT_SIZE)
    assert jnp.allclose(out, ref, atol=1e-5, rtol=1e-5)

    print("KERNEL_OK")
</pallas_src>

<mosaic_0001>
module attributes {stable_mosaic.version = 11 : i64} {
  func.func @kernel(%arg0: i32, %arg1: memref<2x256xf32, #tpu.memory_space<vmem>>, %arg2: memref<32x2xf32, #tpu.memory_space<vmem>>, %arg3: memref<32x1xf32, #tpu.memory_space<vmem>>, %arg4: memref<32x32xf32, #tpu.memory_space<vmem>>, %arg5: memref<32x1xf32, #tpu.memory_space<vmem>>, %arg6: memref<32x32xf32, #tpu.memory_space<vmem>>, %arg7: memref<32x1xf32, #tpu.memory_space<vmem>>, %arg8: memref<1x32xf32, #tpu.memory_space<vmem>>, %arg9: memref<1x1xf32, #tpu.memory_space<vmem>>, %arg10: memref<1x256xf32, #tpu.memory_space<vmem>>) attributes {dimension_semantics = [#tpu.dimension_semantics<parallel>], iteration_bounds = array<i64: 2>, scalar_prefetch = 0 : i64, scratch_operands = 0 : i64, tpu.core_type = #tpu.core_type<tc>, window_params = [{transform_indices = @transform_0, window_bounds = array<i64: 2, 256>}, {pipeline_mode = #tpu.pipeline_mode<synchronous>, transform_indices = @transform_1, window_bounds = array<i64: 32, 2>}, {pipeline_mode = #tpu.pipeline_mode<synchronous>, transform_indices = @transform_2, window_bounds = array<i64: 32, 1>}, {pipeline_mode = #tpu.pipeline_mode<synchronous>, transform_indices = @transform_3, window_bounds = array<i64: 32, 32>}, {pipeline_mode = #tpu.pipeline_mode<synchronous>, transform_indices = @transform_4, window_bounds = array<i64: 32, 1>}, {pipeline_mode = #tpu.pipeline_mode<synchronous>, transform_indices = @transform_5, window_bounds = array<i64: 32, 32>}, {pipeline_mode = #tpu.pipeline_mode<synchronous>, transform_indices = @transform_6, window_bounds = array<i64: 32, 1>}, {pipeline_mode = #tpu.pipeline_mode<synchronous>, transform_indices = @transform_7, window_bounds = array<i64: 1, 32>}, {pipeline_mode = #tpu.pipeline_mode<synchronous>, transform_indices = @transform_8, window_bounds = array<i64: 1, 1>}, {transform_indices = @transform_9, window_bounds = array<i64: 1, 256>}]} {
    %c0 = arith.constant 0 : index
    %c0_0 = arith.constant 0 : index
    %0 = vector.load %arg1[%c0, %c0_0] : memref<2x256xf32, #tpu.memory_space<vmem>>, vector<2x256xf32>
    %c0_1 = arith.constant 0 : index
    %c0_2 = arith.constant 0 : index
    %1 = vector.load %arg2[%c0_1, %c0_2] : memref<32x2xf32, #tpu.memory_space<vmem>>, vector<32x2xf32>
    %c0_3 = arith.constant 0 : index
    %c0_4 = arith.constant 0 : index
    %2 = vector.load %arg3[%c0_3, %c0_4] : memref<32x1xf32, #tpu.memory_space<vmem>>, vector<32x1xf32>
    %3 = vector.extract_strided_slice %1 {offsets = [0, 0], sizes = [32, 1], strides = [1, 1]} : vector<32x2xf32> to vector<32x1xf32>
    %4 = vector.extract_strided_slice %0 {offsets = [0, 0], sizes = [1, 256], strides = [1, 1]} : vector<2x256xf32> to vector<1x256xf32>
    %5 = vector.broadcast %3 : vector<32x1xf32> to vector<32x256xf32>
    %6 = vector.broadcast %4 : vector<1x256xf32> to vector<32x256xf32>
    %7 = arith.mulf %5, %6 : vector<32x256xf32>
    %8 = vector.broadcast %2 : vector<32x1xf32> to vector<32x256xf32>
    %9 = arith.addf %8, %7 : vector<32x256xf32>
    %10 = vector.extract_strided_slice %1 {offsets = [0, 1], sizes = [32, 1], strides = [1, 1]} : vector<32x2xf32> to vector<32x1xf32>
    %11 = vector.extract_strided_slice %0 {offsets = [1, 0], sizes = [1, 256], strides = [1, 1]} : vector<2x256xf32> to vector<1x256xf32>
    %12 = vector.broadcast %10 : vector<32x1xf32> to vector<32x256xf32>
    %13 = vector.broadcast %11 : vector<1x256xf32> to vector<32x256xf32>
    %14 = arith.mulf %12, %13 : vector<32x256xf32>
    %15 = arith.addf %9, %14 : vector<32x256xf32>
    %16 = math.tanh %15 : vector<32x256xf32>
    %c0_5 = arith.constant 0 : index
    %c0_6 = arith.constant 0 : index
    %17 = vector.load %arg4[%c0_5, %c0_6] : memref<32x32xf32, #tpu.memory_space<vmem>>, vector<32x32xf32>
    %c0_7 = arith.constant 0 : index
    %c0_8 = arith.constant 0 : index
    %18 = vector.load %arg5[%c0_7, %c0_8] : memref<32x1xf32, #tpu.memory_space<vmem>>, vector<32x1xf32>
    %cst = arith.constant dense<0.000000e+00> : vector<32x256xf32>
    %19 = tpu.matmul %17, %16, %cst {dimension_numbers = #tpu.dot_dimension_numbers<[1], [0], [0], [1], [0, 0, 1, 1], [], []>} : vector<32x32xf32>, vector<32x256xf32>, vector<32x256xf32> -> vector<32x256xf32>
    %20 = vector.broadcast %18 : vector<32x1xf32> to vector<32x256xf32>
    %21 = arith.addf %19, %20 : vector<32x256xf32>
    %22 = math.tanh %21 : vector<32x256xf32>
    %c0_9 = arith.constant 0 : index
    %c0_10 = arith.constant 0 : index
    %23 = vector.load %arg6[%c0_9, %c0_10] : memref<32x32xf32, #tpu.memory_space<vmem>>, vector<32x32xf32>
    %c0_11 = arith.constant 0 : index
    %c0_12 = arith.constant 0 : index
    %24 = vector.load %arg7[%c0_11, %c0_12] : memref<32x1xf32, #tpu.memory_space<vmem>>, vector<32x1xf32>
    %cst_13 = arith.constant dense<0.000000e+00> : vector<32x256xf32>
    %25 = tpu.matmul %23, %22, %cst_13 {dimension_numbers = #tpu.dot_dimension_numbers<[1], [0], [0], [1], [0, 0, 1, 1], [], []>} : vector<32x32xf32>, vector<32x256xf32>, vector<32x256xf32> -> vector<32x256xf32>
    %26 = vector.broadcast %24 : vector<32x1xf32> to vector<32x256xf32>
    %27 = arith.addf %25, %26 : vector<32x256xf32>
    %28 = math.tanh %27 : vector<32x256xf32>
    %c0_14 = arith.constant 0 : index
    %c0_15 = arith.constant 0 : index
    %29 = vector.load %arg8[%c0_14, %c0_15] : memref<1x32xf32, #tpu.memory_space<vmem>>, vector<1x32xf32>
    %c0_16 = arith.constant 0 : index
    %c0_17 = arith.constant 0 : index
    %30 = vector.load %arg9[%c0_16, %c0_17] : memref<1x1xf32, #tpu.memory_space<vmem>>, vector<1x1xf32>
    %cst_18 = arith.constant dense<0.000000e+00> : vector<1x256xf32>
    %31 = tpu.matmul %29, %28, %cst_18 {dimension_numbers = #tpu.dot_dimension_numbers<[1], [0], [0], [1], [0, 0, 1, 1], [], []>} : vector<1x32xf32>, vector<32x256xf32>, vector<1x256xf32> -> vector<1x256xf32>
    %32 = vector.broadcast %30 : vector<1x1xf32> to vector<1x256xf32>
    %33 = arith.addf %31, %32 : vector<1x256xf32>
    %c0_19 = arith.constant 0 : index
    %c0_20 = arith.constant 0 : index
    %34 = vector.load %arg10[%c0_19, %c0_20] : memref<1x256xf32, #tpu.memory_space<vmem>>, vector<1x256xf32>
    tpu.vector_store %arg10[%c0_19, %c0_20], %33 {strides = array<i32>} : memref<1x256xf32, #tpu.memory_space<vmem>>, vector<1x256xf32>,
    return
  }
  func.func @transform_0(%arg0: i32) -> (i32, i32) {
    %c0_i32 = arith.constant 0 : i32
    %c0_i32_0 = arith.constant 0 : i32
    return %c0_i32, %arg0 : i32, i32
  }
  func.func @transform_1(%arg0: i32) -> (i32, i32) {
    %c0_i32 = arith.constant 0 : i32
    %c0_i32_0 = arith.constant 0 : i32
    %c0_i32_1 = arith.constant 0 : i32
    return %c0_i32, %c0_i32_0 : i32, i32
  }
  func.func @transform_2(%arg0: i32) -> (i32, i32) {
    %c0_i32 = arith.constant 0 : i32
    %c0_i32_0 = arith.constant 0 : i32
    %c0_i32_1 = arith.constant 0 : i32
    return %c0_i32, %c0_i32_0 : i32, i32
  }
  func.func @transform_3(%arg0: i32) -> (i32, i32) {
    %c0_i32 = arith.constant 0 : i32
    %c0_i32_0 = arith.constant 0 : i32
    %c0_i32_1 = arith.constant 0 : i32
    return %c0_i32, %c0_i32_0 : i32, i32
  }
  func.func @transform_4(%arg0: i32) -> (i32, i32) {
    %c0_i32 = arith.constant 0 : i32
    %c0_i32_0 = arith.constant 0 : i32
    %c0_i32_1 = arith.constant 0 : i32
    return %c0_i32, %c0_i32_0 : i32, i32
  }
  func.func @transform_5(%arg0: i32) -> (i32, i32) {
    %c0_i32 = arith.constant 0 : i32
    %c0_i32_0 = arith.constant 0 : i32
    %c0_i32_1 = arith.constant 0 : i32
    return %c0_i32, %c0_i32_0 : i32, i32
  }
  func.func @transform_6(%arg0: i32) -> (i32, i32) {
    %c0_i32 = arith.constant 0 : i32
    %c0_i32_0 = arith.constant 0 : i32
    %c0_i32_1 = arith.constant 0 : i32
    return %c0_i32, %c0_i32_0 : i32, i32
  }
  func.func @transform_7(%arg0: i32) -> (i32, i32) {
    %c0_i32 = arith.constant 0 : i32
    %c0_i32_0 = arith.constant 0 : i32
    %c0_i32_1 = arith.constant 0 : i32
    return %c0_i32, %c0_i32_0 : i32, i32
  }
  func.func @transform_8(%arg0: i32) -> (i32, i32) {
    %c0_i32 = arith.constant 0 : i32
    %c0_i32_0 = arith.constant 0 : i32
    %c0_i32_1 = arith.constant 0 : i32
    return %c0_i32, %c0_i32_0 : i32, i32
  }
  func.func @transform_9(%arg0: i32) -> (i32, i32) {
    %c0_i32 = arith.constant 0 : i32
    %c0_i32_0 = arith.constant 0 : i32
    return %c0_i32, %arg0 : i32, i32
  }
}

</mosaic_0001>

<llo_original>
// kernel: inr_forward.1
$region0: #{inr_forward.1}
  #allocation0 [shape = 'u32[]', space=smem, size = 0x4, offset = 0x4, fixed_abs, tag = 'smem constant byte address 0x4 - core index']
  #allocation1 [shape = 'u32[72,128]{1,0:T(1,128)}', space=vmem, size = 0x9000, scoped, tag = 'internal scratch']
  #allocation2 [shape = 'f32[1,1]{1,0:T(1,128)S(1)}', space=vmem, size = 0x200, scoped, tag = 'scoped memory for inr_forward.1']
  %s0 = inlined_call_operand.vmem [shape: f32[2,512], index: 0, kind: input, shape index: {}]
  %s1 = inlined_call_operand.vmem [shape: f32[32,2], index: 1, kind: input, shape index: {}]
  %s2 = inlined_call_operand.vmem [shape: f32[32,1], index: 2, kind: input, shape index: {}]
  %s3 = inlined_call_operand.vmem [shape: f32[32,32], index: 3, kind: input, shape index: {}]
  %s4 = inlined_call_operand.vmem [shape: f32[32,1], index: 4, kind: input, shape index: {}]
  %s5 = inlined_call_operand.vmem [shape: f32[32,32], index: 5, kind: input, shape index: {}]
  %s6 = inlined_call_operand.vmem [shape: f32[32,1], index: 6, kind: input, shape index: {}]
  %s7 = inlined_call_operand.vmem [shape: f32[1,32], index: 7, kind: input, shape index: {}]
  %s8 = inlined_call_operand.<no memory space> [shape: f32[1,1], index: 8, kind: input, shape index: {}]
  %s9 = inlined_call_operand.vmem [shape: f32[1,512], index: 9, kind: output, shape index: {}]
  %s10 = sld [smem:[#allocation0]]
  $region69: #{inr_forward.1} parent=0
    _
  %s12 = ssub.s32 1, %s10
  %s13 = scalar_select 0, %s12, %s10
  %v14 = vstv %s8
  %15 = vst [vmem:[#allocation2] sm:$0x1] %v14
  loop: start=0, step=1, limit=4
  $region2: #{inr_forward.1} parent=0 // loop_pre_header
    _
  $region3: #{inr_forward.1} parent=0 // loop_header
    %s17 = sphi 0, %s21
    %p18 = scmp.ge.s32.totalorder %s17, 4
    %s27 = sphi 0, %s29
    %s30 = sphi 0, %s27
    %s31 = sphi 0, %s30
    %s47 = sphi 0, %s31
    %s51 = sphi 0, %s51
    %s53 = sphi 0, %s51
    %s54 = sphi 0, %s53
    %s68 = sphi 0, %s54
    %s72 = sphi 0, %s72
    %s74 = sphi 0, %s72
    %s75 = sphi 0, %s74
    %s89 = sphi 0, %s75
    %s93 = sphi 0, %s93
    %s95 = sphi 0, %s93
    %s96 = sphi 0, %s95
    %s110 = sphi 0, %s96
    %s114 = sphi 0, %s114
    %s116 = sphi 0, %s114
    %s117 = sphi 0, %s116
    %s131 = sphi 0, %s117
    %s135 = sphi 0, %s135
    %s137 = sphi 0, %s135
    %s138 = sphi 0, %s137
    %s152 = sphi 0, %s138
    %s156 = sphi 0, %s156
    %s158 = sphi 0, %s156
    %s159 = sphi 0, %s158
    %s173 = sphi 0, %s159
    %s177 = sphi 0, %s177
    %s179 = sphi 0, %s177
    %s180 = sphi 0, %s179
    %s194 = sphi 0, %s180
    %s198 = sphi 0, %s198
    %s200 = sphi 0, %s198
    %s201 = sphi 0, %s200
    %s215 = sphi 0, %s201
    %s221 = sphi 0, %s223
    %s224 = sphi 0, %s221
    %s225 = sphi 0, %s224
    %s241 = sphi 0, %s225
  $region4: #{inr_forward.1} parent=0 // loop_header_branch
    %20 = sbr.rel (%p18) target = $region8
  $region5: #{inr_forward.1} parent=0 // loop_body
    %s22 = ssub.s32 %s17, 1
    %s23 = ssub.s32 %s17, 2
    %s24 = sadd.s32 %s17, 1
    %s25 = ssub.s32 %s17, %s24
    %p26 = scmp.eq.s32.totalorder %s25, 0
    %s28 = sadd.s32 %s27, 1
    %s29 = scalar_select %p26, %s27, %s28
    %p32 = pneg %p26
    %p33 = scmp.eq.s32.totalorder %s17, 1
    %p34 = por %p32, %p33
    %p35 = scmp.ne.s32.totalorder %s27, %s30
    %p36 = scmp.eq.s32.totalorder %s17, 0
    %p37 = por %p35, %p36
    %p38 = scmp.ne.s32.totalorder %s27, %s30
    %p39 = scmp.eq.s32.totalorder %s22, 1
    %p40 = por %p38, %p39
    %p41 = scmp.ne.s32.totalorder %s30, %s31
    %p42 = scmp.eq.s32.totalorder %s22, 0
    %p43 = por %p41, %p42
    %p44 = scmp.ne.s32.totalorder %s30, %s31
    %p45 = scmp.eq.s32.totalorder %s23, 1
    %p46 = por %p44, %p45
    %p48 = scmp.ne.s32.totalorder %s31, %s47
    %p49 = scmp.eq.s32.totalorder %s23, 0
    %p50 = por %p48, %p49
    %s52 = sadd.s32 %s51, 1
    %p55 = scmp.eq.s32.totalorder %s17, 1
    %p56 = scmp.ne.s32.totalorder %s51, %s53
    %p57 = scmp.eq.s32.totalorder %s17, 0
    %p58 = por %p56, %p57
    %p59 = scmp.ne.s32.totalorder %s51, %s53
    %p60 = scmp.eq.s32.totalorder %s22, 1
    %p61 = por %p59, %p60
    %p62 = scmp.ne.s32.totalorder %s53, %s54
    %p63 = scmp.eq.s32.totalorder %s22, 0
    %p64 = por %p62, %p63
    %p65 = scmp.ne.s32.totalorder %s53, %s54
    %p66 = scmp.eq.s32.totalorder %s23, 1
    %p67 = por %p65, %p66
    %p69 = scmp.ne.s32.totalorder %s54, %s68
    %p70 = scmp.eq.s32.totalorder %s23, 0
    %p71 = por %p69, %p70
    %s73 = sadd.s32 %s72, 1
    %p76 = scmp.eq.s32.totalorder %s17, 1
    %p77 = scmp.ne.s32.totalorder %s72, %s74
    %p78 = scmp.eq.s32.totalorder %s17, 0
    %p79 = por %p77, %p78
    %p80 = scmp.ne.s32.totalorder %s72, %s74
    %p81 = scmp.eq.s32.totalorder %s22, 1
    %p82 = por %p80, %p81
    %p83 = scmp.ne.s32.totalorder %s74, %s75
    %p84 = scmp.eq.s32.totalorder %s22, 0
    %p85 = por %p83, %p84
    %p86 = scmp.ne.s32.totalorder %s74, %s75
    %p87 = scmp.eq.s32.totalorder %s23, 1
    %p88 = por %p86, %p87
    %p90 = scmp.ne.s32.totalorder %s75, %s89
    %p91 = scmp.eq.s32.totalorder %s23, 0
    %p92 = por %p90, %p91
    %s94 = sadd.s32 %s93, 1
    %p97 = scmp.eq.s32.totalorder %s17, 1
    %p98 = scmp.ne.s32.totalorder %s93, %s95
    %p99 = scmp.eq.s32.totalorder %s17, 0
    %p100 = por %p98, %p99
    %p101 = scmp.ne.s32.totalorder %s93, %s95
    %p102 = scmp.eq.s32.totalorder %s22, 1
    %p103 = por %p101, %p102
    %p104 = scmp.ne.s32.totalorder %s95, %s96
    %p105 = scmp.eq.s32.totalorder %s22, 0
    %p106 = por %p104, %p105
    %p107 = scmp.ne.s32.totalorder %s95, %s96
    %p108 = scmp.eq.s32.totalorder %s23, 1
    %p109 = por %p107, %p108
    %p111 = scmp.ne.s32.totalorder %s96, %s110
    %p112 = scmp.eq.s32.totalorder %s23, 0
    %p113 = por %p111, %p112
    %s115 = sadd.s32 %s114, 1
    %p118 = scmp.eq.s32.totalorder %s17, 1
    %p119 = scmp.ne.s32.totalorder %s114, %s116
    %p120 = scmp.eq.s32.totalorder %s17, 0
    %p121 = por %p119, %p120
    %p122 = scmp.ne.s32.totalorder %s114, %s116
    %p123 = scmp.eq.s32.totalorder %s22, 1
    %p124 = por %p122, %p123
    %p125 = scmp.ne.s32.totalorder %s116, %s117
    %p126 = scmp.eq.s32.totalorder %s22, 0
    %p127 = por %p125, %p126
    %p128 = scmp.ne.s32.totalorder %s116, %s117
    %p129 = scmp.eq.s32.totalorder %s23, 1
    %p130 = por %p128, %p129
    %p132 = scmp.ne.s32.totalorder %s117, %s131
    %p133 = scmp.eq.s32.totalorder %s23, 0
    %p134 = por %p132, %p133
    %s136 = sadd.s32 %s135, 1
    %p139 = scmp.eq.s32.totalorder %s17, 1
    %p140 = scmp.ne.s32.totalorder %s135, %s137
    %p141 = scmp.eq.s32.totalorder %s17, 0
    %p142 = por %p140, %p141
    %p143 = scmp.ne.s32.totalorder %s135, %s137
    %p144 = scmp.eq.s32.totalorder %s22, 1
    %p145 = por %p143, %p144
    %p146 = scmp.ne.s32.totalorder %s137, %s138
    %p147 = scmp.eq.s32.totalorder %s22, 0
    %p148 = por %p146, %p147
    %p149 = scmp.ne.s32.totalorder %s137, %s138
    %p150 = scmp.eq.s32.totalorder %s23, 1
    %p151 = por %p149, %p150
    %p153 = scmp.ne.s32.totalorder %s138, %s152
    %p154 = scmp.eq.s32.totalorder %s23, 0
    %p155 = por %p153, %p154
    %s157 = sadd.s32 %s156, 1
    %p160 = scmp.eq.s32.totalorder %s17, 1
    %p161 = scmp.ne.s32.totalorder %s156, %s158
    %p162 = scmp.eq.s32.totalorder %s17, 0
    %p163 = por %p161, %p162
    %p164 = scmp.ne.s32.totalorder %s156, %s158
    %p165 = scmp.eq.s32.totalorder %s22, 1
    %p166 = por %p164, %p165
    %p167 = scmp.ne.s32.totalorder %s158, %s159
    %p168 = scmp.eq.s32.totalorder %s22, 0
    %p169 = por %p167, %p168
    %p170 = scmp.ne.s32.totalorder %s158, %s159
    %p171 = scmp.eq.s32.totalorder %s23, 1
    %p172 = por %p170, %p171
    %p174 = scmp.ne.s32.totalorder %s159, %s173
    %p175 = scmp.eq.s32.totalorder %s23, 0
    %p176 = por %p174, %p175
    %s178 = sadd.s32 %s177, 1
    %p181 = scmp.eq.s32.totalorder %s17, 1
    %p182 = scmp.ne.s32.totalorder %s177, %s179
    %p183 = scmp.eq.s32.totalorder %s17, 0
    %p184 = por %p182, %p183
    %p185 = scmp.ne.s32.totalorder %s177, %s179
    %p186 = scmp.eq.s32.totalorder %s22, 1
    %p187 = por %p185, %p186
    %p188 = scmp.ne.s32.totalorder %s179, %s180
    %p189 = scmp.eq.s32.totalorder %s22, 0
    %p190 = por %p188, %p189
    %p191 = scmp.ne.s32.totalorder %s179, %s180
    %p192 = scmp.eq.s32.totalorder %s23, 1
    %p193 = por %p191, %p192
    %p195 = scmp.ne.s32.totalorder %s180, %s194
    %p196 = scmp.eq.s32.totalorder %s23, 0
    %p197 = por %p195, %p196
    %s199 = sadd.s32 %s198, 1
    %p202 = scmp.eq.s32.totalorder %s17, 1
    %p203 = scmp.ne.s32.totalorder %s198, %s200
    %p204 = scmp.eq.s32.totalorder %s17, 0
    %p205 = por %p203, %p204
    %p206 = scmp.ne.s32.totalorder %s198, %s200
    %p207 = scmp.eq.s32.totalorder %s22, 1
    %p208 = por %p206, %p207
    %p209 = scmp.ne.s32.totalorder %s200, %s201
    %p210 = scmp.eq.s32.totalorder %s22, 0
    %p211 = por %p209, %p210
    %p212 = scmp.ne.s32.totalorder %s200, %s201
    %p213 = scmp.eq.s32.totalorder %s23, 1
    %p214 = por %p212, %p213
    %p216 = scmp.ne.s32.totalorder %s201, %s215
    %p217 = scmp.eq.s32.totalorder %s23, 0
    %p218 = por %p216, %p217
    %s219 = ssub.s32 %s17, %s24
    %p220 = scmp.eq.s32.totalorder %s219, 0
    %s222 = sadd.s32 %s221, 1
    %s223 = scalar_select %p220, %s221, %s222
    %p226 = pneg %p220
    %p227 = scmp.eq.s32.totalorder %s17, 1
    %p228 = por %p226, %p227
    %p229 = scmp.ne.s32.totalorder %s221, %s224
    %p230 = scmp.eq.s32.totalorder %s17, 0
    %p231 = por %p229, %p230
    %p232 = scmp.ne.s32.totalorder %s221, %s224
    %p233 = scmp.eq.s32.totalorder %s22, 1
    %p234 = por %p232, %p233
    %p235 = scmp.ne.s32.totalorder %s224, %s225
    %p236 = scmp.eq.s32.totalorder %s22, 0
    %p237 = por %p235, %p236
    %p238 = scmp.ne.s32.totalorder %s224, %s225
    %p239 = scmp.eq.s32.totalorder %s23, 1
    %p240 = por %p238, %p239
    %p242 = scmp.ne.s32.totalorder %s225, %s241
    %p243 = scmp.eq.s32.totalorder %s23, 0
    %p244 = por %p242, %p243
    %p245 = scmp.le.s32.totalorder 1, %s17
    %p246 = scmp.lt.s32.totalorder %s17, 3
    %p247 = pnand %p245, %p246
    %p248 = pneg %p247
    // Predicated region
    $region9: #{inr_forward.1} parent=5 // pred_check
      _
    $region10: #{inr_forward.1} parent=5 // pred_check_branch
      %250 = sbr.rel (%p247) target = $region12
    $region11: #{inr_forward.1} parent=5 // pred_region
      %s251 = ssub.s32 %s17, 1
      // Predicated region
      $region13: #{inr_forward.1} parent=11 // pred_check
        %p252 = pneg %p64
      $region14: #{inr_forward.1} parent=11 // pred_check_branch
        %254 = sbr.rel (%p252) target = $region16
      $region15: #{inr_forward.1} parent=11 // pred_region
        _
      $region16: #{inr_forward.1} parent=11 // pred_fallthru
        _
      // Predicated region
      $region17: #{inr_forward.1} parent=11 // pred_check
        %p255 = pneg %p85
      $region18: #{inr_forward.1} parent=11 // pred_check_branch
        %257 = sbr.rel (%p255) target = $region20
      $region19: #{inr_forward.1} parent=11 // pred_region
        _
      $region20: #{inr_forward.1} parent=11 // pred_fallthru
        _
      // Predicated region
      $region21: #{inr_forward.1} parent=11 // pred_check
        %p258 = pneg %p106
      $region22: #{inr_forward.1} parent=11 // pred_check_branch
        %260 = sbr.rel (%p258) target = $region24
      $region23: #{inr_forward.1} parent=11 // pred_region
        _
      $region24: #{inr_forward.1} parent=11 // pred_fallthru
        _
      // Predicated region
      $region25: #{inr_forward.1} parent=11 // pred_check
        %p261 = pneg %p127
      $region26: #{inr_forward.1} parent=11 // pred_check_branch
        %263 = sbr.rel (%p261) target = $region28
      $region27: #{inr_forward.1} parent=11 // pred_region
        _
      $region28: #{inr_forward.1} parent=11 // pred_fallthru
        _
      // Predicated region
      $region29: #{inr_forward.1} parent=11 // pred_check
        %p264 = pneg %p148
      $region30: #{inr_forward.1} parent=11 // pred_check_branch
        %266 = sbr.rel (%p264) target = $region32
      $region31: #{inr_forward.1} parent=11 // pred_region
        _
      $region32: #{inr_forward.1} parent=11 // pred_fallthru
        _
      // Predicated region
      $region33: #{inr_forward.1} parent=11 // pred_check
        %p267 = pneg %p169
      $region34: #{inr_forward.1} parent=11 // pred_check_branch
        %269 = sbr.rel (%p267) target = $region36
      $region35: #{inr_forward.1} parent=11 // pred_region
        _
      $region36: #{inr_forward.1} parent=11 // pred_fallthru
        _
      // Predicated region
      $region37: #{inr_forward.1} parent=11 // pred_check
        %p270 = pneg %p190
      $region38: #{inr_forward.1} parent=11 // pred_check_branch
        %272 = sbr.rel (%p270) target = $region40
      $region39: #{inr_forward.1} parent=11 // pred_region
        _
      $region40: #{inr_forward.1} parent=11 // pred_fallthru
        _
      // Predicated region
      $region41: #{inr_forward.1} parent=11 // pred_check
        %p273 = pneg %p211
      $region42: #{inr_forward.1} parent=11 // pred_check_branch
        %275 = sbr.rel (%p273) target = $region44
      $region43: #{inr_forward.1} parent=11 // pred_region
        _
      $region44: #{inr_forward.1} parent=11 // pred_fallthru
        _
    $region12: #{inr_forward.1} parent=5 // pred_fallthru
      _
    %p276 = scmp.lt.s32.totalorder %s17, 2
    // Predicated region
    $region45: #{inr_forward.1} parent=5 // pred_check
      %p277 = pneg %p276
    $region46: #{inr_forward.1} parent=5 // pred_check_branch
      %279 = sbr.rel (%p277) target = $region48
    $region47: #{inr_forward.1} parent=5 // pred_region
      // Predicated region
      $region49: #{inr_forward.1} parent=47 // pred_check
        %p280 = pneg %p37
      $region50: #{inr_forward.1} parent=47 // pred_check_branch
        %282 = sbr.rel (%p280) target = $region52
      $region51: #{inr_forward.1} parent=47 // pred_region
        %s283 = smul.u32 2, %s17
        %p284 = scmp.lt.s32.totalorder %s283, 3
        %s285 = scalar_select %p284, %s283, 3
        %s286 = smul.addr %s285, 2
        %s287 = scalar_lea.vmem %s0, %s286
        %s288 = smul.u32 2, %s17
      $region52: #{inr_forward.1} parent=47 // pred_fallthru
        _
    $region48: #{inr_forward.1} parent=5 // pred_fallthru
      _
    %p289 = scmp.le.s32.totalorder 1, %s17
    %p290 = scmp.lt.s32.totalorder %s17, 3
    %p291 = pnand %p289, %p290
    %p292 = pneg %p291
    // Predicated region
    $region53: #{inr_forward.1} parent=5 // pred_check
      _
    $region54: #{inr_forward.1} parent=5 // pred_check_branch
      %294 = sbr.rel (%p291) target = $region56
    $region55: #{inr_forward.1} parent=5 // pred_region
      %s295 = ssub.s32 %s17, 1
      %s296 = smul.u32 2, %s22
      %p297 = scmp.lt.s32.totalorder %s296, 3
      %s298 = scalar_select %p297, %s296, 3
      %s299 = smul.addr %s298, 2
      %s300 = scalar_lea.vmem %s0, %s299
      %p301 = pneg %p43
      %p302 = pneg %p40
      %p303 = pneg %p64
      %p304 = pneg %p61
      %p305 = pneg %p85
      %p306 = pneg %p82
      %p307 = pneg %p106
      %p308 = pneg %p103
      %p309 = pneg %p127
      %p310 = pneg %p124
      %p311 = pneg %p148
      %p312 = pneg %p145
      %p313 = pneg %p169
      %p314 = pneg %p166
      %p315 = pneg %p190
      %p316 = pneg %p187
      %p317 = pneg %p211
      %p318 = pneg %p208
      %p319 = pneg %p237
      %p320 = pneg %p234
      %s321 = smul.u32 2, %s22
      %p322 = scmp.lt.s32.totalorder %s321, 3
      %s323 = scalar_select %p322, %s321, 3
      %s324 = scalar_lea.vmem %s9, %s323
      %s325 = smul.u32 2, %s22
      %p326 = scmp.lt.s32.totalorder %s325, 3
      %s327 = scalar_select %p326, %s325, 3
      %s328 = smul.addr %s327, 2
      %s329 = scalar_lea.vmem %s0, %s328
      %s330 = smul.u32 2, %s22
      %s331 = smul.u32 2, %s22
      %p332 = scmp.lt.s32.totalorder %s331, 3
      %s333 = scalar_select %p332, %s331, 3
      %s334 = scalar_lea.vmem %s9, %s333
      %s335 = smul.u32 2, %s22
      %v336 = vld [vmem:[%s329] sm:$0xf]
      %v337 = vld [vmem:[%s1] sm:$0xff]
      %v338 = vld [vmem:[%s1 + $0x8] sm:$0xff]
      %v339 = vld [vmem:[%s1 + $0x10] sm:$0xff]
      %v340 = vld [vmem:[%s1 + $0x18] sm:$0xff]
      %v341 = vld [vmem:[%s2] sm:$0xff]
      %v342 = vld [vmem:[%s2 + $0x8] sm:$0xff]
      %v343 = vld [vmem:[%s2 + $0x10] sm:$0xff]
      %v344 = vld [vmem:[%s2 + $0x18] sm:$0xff]
      %346 = vset.pattern.permute.xlu0 0
      %347 = vperm.xlu0 %346, %v337
      %v348 = vpop.permute.xlu0 %347
      %351 = vset.pattern.permute.xlu0 0
      %352 = vperm.xlu0 %351, %v338
      %v353 = vpop.permute.xlu0 %352
      %356 = vset.pattern.permute.xlu0 0
      %357 = vperm.xlu0 %356, %v339
      %v358 = vpop.permute.xlu0 %357
      %361 = vset.pattern.permute.xlu0 0
      %362 = vperm.xlu0 %361, %v340
      %v363 = vpop.permute.xlu0 %362
      %v366 = vperm.slane %v336, 0
      %v367 = vperm.slane %v336, 2
      %v370 = vperm.slane %v366, 0
      %v371 = vperm.slane %v367, 0
      %v372 = vmul.f32 %v348, %v370
      %v373 = vmul.f32 %v348, %v371
      %v374 = vmul.f32 %v353, %v370
      %v375 = vmul.f32 %v353, %v371
      %v376 = vmul.f32 %v358, %v370
      %v377 = vmul.f32 %v358, %v371
      %v378 = vmul.f32 %v363, %v370
      %v379 = vmul.f32 %v363, %v371
      %381 = vset.pattern.permute.xlu0 0
      %382 = vperm.xlu0 %381, %v341
      %v383 = vpop.permute.xlu0 %382
      %386 = vset.pattern.permute.xlu0 0
      %387 = vperm.xlu0 %386, %v342
      %v388 = vpop.permute.xlu0 %387
      %391 = vset.pattern.permute.xlu0 0
      %392 = vperm.xlu0 %391, %v343
      %v393 = vpop.permute.xlu0 %392
      %396 = vset.pattern.permute.xlu0 0
      %397 = vperm.xlu0 %396, %v344
      %v398 = vpop.permute.xlu0 %397
      %v400 = vadd.f32 %v383, %v372
      %v401 = vadd.f32 %v383, %v373
      %v402 = vadd.f32 %v388, %v374
      %v403 = vadd.f32 %v388, %v375
      %v404 = vadd.f32 %v393, %v376
      %v405 = vadd.f32 %v393, %v377
      %v406 = vadd.f32 %v398, %v378
      %v407 = vadd.f32 %v398, %v379
      %408 = vset.pattern.permute.xlu0 1
      %409 = vperm.xlu0 %408, %v337
      %v410 = vpop.permute.xlu0 %409
      %412 = vset.pattern.permute.xlu0 1
      %413 = vperm.xlu0 %412, %v338
      %v414 = vpop.permute.xlu0 %413
      %416 = vset.pattern.permute.xlu0 1
      %417 = vperm.xlu0 %416, %v339
      %v418 = vpop.permute.xlu0 %417
      %420 = vset.pattern.permute.xlu0 1
      %421 = vperm.xlu0 %420, %v340
      %v422 = vpop.permute.xlu0 %421
      %v424 = vperm.slane %v336, 1
      %v425 = vperm.slane %v336, 3
      %v428 = vperm.slane %v424, 1
      %v429 = vperm.slane %v425, 1
      %v430 = vmul.f32 %v410, %v428
      %v431 = vmul.f32 %v410, %v429
      %v432 = vmul.f32 %v414, %v428
      %v433 = vmul.f32 %v414, %v429
      %v434 = vmul.f32 %v418, %v428
      %v435 = vmul.f32 %v418, %v429
      %v436 = vmul.f32 %v422, %v428
      %v437 = vmul.f32 %v422, %v429
      %v438 = vadd.f32 %v400, %v430
      %v439 = vadd.f32 %v401, %v431
      %v440 = vadd.f32 %v402, %v432
      %v441 = vadd.f32 %v403, %v433
      %v442 = vadd.f32 %v404, %v434
      %v443 = vadd.f32 %v405, %v435
      %v444 = vadd.f32 %v406, %v436
      %v445 = vadd.f32 %v407, %v437
      %v446 = vtanh.pop %v438
      %v447 = vtanh.pop %v439
      %v448 = vtanh.pop %v440
      %v449 = vtanh.pop %v441
      %v450 = vtanh.pop %v442
      %v451 = vtanh.pop %v443
      %v452 = vtanh.pop %v444
      %v453 = vtanh.pop %v445
      %v454 = vld [vmem:[%s3] sm:$0xff]
      %v455 = vld [vmem:[%s3 + $0x8] sm:$0xff]
      %v456 = vld [vmem:[%s3 + $0x10] sm:$0xff]
      %v457 = vld [vmem:[%s3 + $0x18] sm:$0xff]
      %v458 = vld [vmem:[%s4] sm:$0xff]
      %v459 = vld [vmem:[%s4 + $0x8] sm:$0xff]
      %v460 = vld [vmem:[%s4 + $0x10] sm:$0xff]
      %v461 = vld [vmem:[%s4 + $0x18] sm:$0xff]
      %463 = vset.pattern.permute.xlu0 0
      %464 = vperm.xlu0 %463, %v458
      %v465 = vpop.permute.xlu0 %464
      %468 = vset.pattern.permute.xlu0 0
      %469 = vperm.xlu0 %468, %v459
      %v470 = vpop.permute.xlu0 %469
      %473 = vset.pattern.permute.xlu0 0
      %474 = vperm.xlu0 %473, %v460
      %v475 = vpop.permute.xlu0 %474
      %478 = vset.pattern.permute.xlu0 0
      %479 = vperm.xlu0 %478, %v461
      %v480 = vpop.permute.xlu0 %479
      %vm482 = vcmask 261120
      %v484 = vsel %vm482, %v454, 0
      %v487 = vsel %vm482, %v455, 0
      %v490 = vsel %vm482, %v456, 0
      %v493 = vsel %vm482, %v457, 0
      %495 = vmatpush.msra.mxu0 0.0
      %496 = vmatpush.msra.mxu0 0.0
      %497 = vmatpush.msra.mxu0 0.0
      %498 = vmatpush.msra.mxu0 0.0
      %499 = vmatpush.msra.mxu0 0.0
      %500 = vmatpush.msra.mxu0 0.0
      %501 = vmatpush.msra.mxu0 0.0
      %502 = vmatpush.msra.mxu0 0.0
      %503 = vmatpush.msra.mxu0 0.0
      %504 = vmatpush.msra.mxu0 0.0
      %505 = vmatpush.msra.mxu0 0.0
      %506 = vmatpush.msra.mxu0 0.0
      %507 = vmatpush.msra.mxu0 %v452
      %508 = vmatpush.msra.mxu0 %v450
      %509 = vmatpush.msra.mxu0 %v448
      %510 = vmatpush.msra.mxu0 %v446
      %511 = vmatmul.f32.gmra.mxu0 %v484
      %v512 = vpop.f32.mrf.mxu0
      %v513 = vadd.f32 %v465, %v512
      %514 = vmatmul.f32.gmra.mxu0 %v487
      %v515 = vpop.f32.mrf.mxu0
      %v516 = vadd.f32 %v470, %v515
      %517 = vmatmul.f32.gmra.mxu0 %v490
      %v518 = vpop.f32.mrf.mxu0
      %v519 = vadd.f32 %v475, %v518
      %520 = vmatmul.f32.gmra.mxu0 %v493
      %v521 = vpop.f32.mrf.mxu0
      %v522 = vadd.f32 %v480, %v521
      %523 = vdwg.mxu0
      %524 = vmatpush.msra.mxu0 0.0
      %525 = vmatpush.msra.mxu0 0.0
      %526 = vmatpush.msra.mxu0 0.0
      %527 = vmatpush.msra.mxu0 0.0
      %528 = vmatpush.msra.mxu0 0.0
      %529 = vmatpush.msra.mxu0 0.0
      %530 = vmatpush.msra.mxu0 0.0
      %531 = vmatpush.msra.mxu0 0.0
      %532 = vmatpush.msra.mxu0 0.0
      %533 = vmatpush.msra.mxu0 0.0
      %534 = vmatpush.msra.mxu0 0.0
      %535 = vmatpush.msra.mxu0 0.0
      %536 = vmatpush.msra.mxu0 %v453
      %537 = vmatpush.msra.mxu0 %v451
      %538 = vmatpush.msra.mxu0 %v449
      %539 = vmatpush.msra.mxu0 %v447
      %540 = vmatmul.f32.gmra.mxu0 %v484
      %v541 = vpop.f32.mrf.mxu0
      %v542 = vadd.f32 %v465, %v541
      %543 = vmatmul.f32.gmra.mxu0 %v487
      %v544 = vpop.f32.mrf.mxu0
      %v545 = vadd.f32 %v470, %v544
      %546 = vmatmul.f32.gmra.mxu0 %v490
      %v547 = vpop.f32.mrf.mxu0
      %v548 = vadd.f32 %v475, %v547
      %549 = vmatmul.f32.gmra.mxu0 %v493
      %v550 = vpop.f32.mrf.mxu0
      %v551 = vadd.f32 %v480, %v550
      %552 = vdwg.mxu0
      %v553 = vtanh.pop %v513
      %v554 = vtanh.pop %v542
      %v555 = vtanh.pop %v516
      %v556 = vtanh.pop %v545
      %v557 = vtanh.pop %v519
      %v558 = vtanh.pop %v548
      %v559 = vtanh.pop %v522
      %v560 = vtanh.pop %v551
      %v561 = vld [vmem:[%s5] sm:$0xff]
      %v562 = vld [vmem:[%s5 + $0x8] sm:$0xff]
      %v563 = vld [vmem:[%s5 + $0x10] sm:$0xff]
      %v564 = vld [vmem:[%s5 + $0x18] sm:$0xff]
      %v565 = vld [vmem:[%s6] sm:$0xff]
      %v566 = vld [vmem:[%s6 + $0x8] sm:$0xff]
      %v567 = vld [vmem:[%s6 + $0x10] sm:$0xff]
      %v568 = vld [vmem:[%s6 + $0x18] sm:$0xff]
      %570 = vset.pattern.permute.xlu0 0
      %571 = vperm.xlu0 %570, %v565
      %v572 = vpop.permute.xlu0 %571
      %575 = vset.pattern.permute.xlu0 0
      %576 = vperm.xlu0 %575, %v566
      %v577 = vpop.permute.xlu0 %576
      %580 = vset.pattern.permute.xlu0 0
      %581 = vperm.xlu0 %580, %v567
      %v582 = vpop.permute.xlu0 %581
      %585 = vset.pattern.permute.xlu0 0
      %586 = vperm.xlu0 %585, %v568
      %v587 = vpop.permute.xlu0 %586
      %v590 = vsel %vm482, %v561, 0
      %v593 = vsel %vm482, %v562, 0
      %v596 = vsel %vm482, %v563, 0
      %v599 = vsel %vm482, %v564, 0
      %601 = vmatpush.msra.mxu0 0.0
      %602 = vmatpush.msra.mxu0 0.0
      %603 = vmatpush.msra.mxu0 0.0
      %604 = vmatpush.msra.mxu0 0.0
      %605 = vmatpush.msra.mxu0 0.0
      %606 = vmatpush.msra.mxu0 0.0
      %607 = vmatpush.msra.mxu0 0.0
      %608 = vmatpush.msra.mxu0 0.0
      %609 = vmatpush.msra.mxu0 0.0
      %610 = vmatpush.msra.mxu0 0.0
      %611 = vmatpush.msra.mxu0 0.0
      %612 = vmatpush.msra.mxu0 0.0
      %613 = vmatpush.msra.mxu0 %v559
      %614 = vmatpush.msra.mxu0 %v557
      %615 = vmatpush.msra.mxu0 %v555
      %616 = vmatpush.msra.mxu0 %v553
      %617 = vmatmul.f32.gmra.mxu0 %v590
      %v618 = vpop.f32.mrf.mxu0
      %v619 = vadd.f32 %v572, %v618
      %620 = vmatmul.f32.gmra.mxu0 %v593
      %v621 = vpop.f32.mrf.mxu0
      %v622 = vadd.f32 %v577, %v621
      %623 = vmatmul.f32.gmra.mxu0 %v596
      %v624 = vpop.f32.mrf.mxu0
      %v625 = vadd.f32 %v582, %v624
      %626 = vmatmul.f32.gmra.mxu0 %v599
      %v627 = vpop.f32.mrf.mxu0
      %v628 = vadd.f32 %v587, %v627
      %629 = vdwg.mxu0
      %630 = vmatpush.msra.mxu0 0.0
      %631 = vmatpush.msra.mxu0 0.0
      %632 = vmatpush.msra.mxu0 0.0
      %633 = vmatpush.msra.mxu0 0.0
      %634 = vmatpush.msra.mxu0 0.0
      %635 = vmatpush.msra.mxu0 0.0
      %636 = vmatpush.msra.mxu0 0.0
      %637 = vmatpush.msra.mxu0 0.0
      %638 = vmatpush.msra.mxu0 0.0
      %639 = vmatpush.msra.mxu0 0.0
      %640 = vmatpush.msra.mxu0 0.0
      %641 = vmatpush.msra.mxu0 0.0
      %642 = vmatpush.msra.mxu0 %v560
      %643 = vmatpush.msra.mxu0 %v558
      %644 = vmatpush.msra.mxu0 %v556
      %645 = vmatpush.msra.mxu0 %v554
      %646 = vmatmul.f32.gmra.mxu0 %v590
      %v647 = vpop.f32.mrf.mxu0
      %v648 = vadd.f32 %v572, %v647
      %649 = vmatmul.f32.gmra.mxu0 %v593
      %v650 = vpop.f32.mrf.mxu0
      %v651 = vadd.f32 %v577, %v650
      %652 = vmatmul.f32.gmra.mxu0 %v596
      %v653 = vpop.f32.mrf.mxu0
      %v654 = vadd.f32 %v582, %v653
      %655 = vmatmul.f32.gmra.mxu0 %v599
      %v656 = vpop.f32.mrf.mxu0
      %v657 = vadd.f32 %v587, %v656
      %658 = vdwg.mxu0
      %v659 = vtanh.pop %v619
      %v660 = vtanh.pop %v648
      %v661 = vtanh.pop %v622
      %v662 = vtanh.pop %v651
      %v663 = vtanh.pop %v625
      %v664 = vtanh.pop %v654
      %v665 = vtanh.pop %v628
      %v666 = vtanh.pop %v657
      %v667 = vld [vmem:[%s7] sm:$0x1]
      %v668 = vld [vmem:[#allocation2] sm:$0x1]
      %670 = vset.pattern.permute.xlu0 0
      %671 = vperm.xlu0 %670, %v668
      %v672 = vpop.permute.xlu0 %671
      %v674 = vperm.slane %v672, 0
      %v676 = vsel %vm482, %v667, 0
      %678 = vmatpush.msra.mxu0 0.0
      %679 = vmatpush.msra.mxu0 0.0
      %680 = vmatpush.msra.mxu0 0.0
      %681 = vmatpush.msra.mxu0 0.0
      %682 = vmatpush.msra.mxu0 0.0
      %683 = vmatpush.msra.mxu0 0.0
      %684 = vmatpush.msra.mxu0 0.0
      %685 = vmatpush.msra.mxu0 0.0
      %686 = vmatpush.msra.mxu0 0.0
      %687 = vmatpush.msra.mxu0 0.0
      %688 = vmatpush.msra.mxu0 0.0
      %689 = vmatpush.msra.mxu0 0.0
      %690 = vmatpush.msra.mxu0 %v665
      %691 = vmatpush.msra.mxu0 %v663
      %692 = vmatpush.msra.mxu0 %v661
      %693 = vmatpush.msra.mxu0 %v659
      %694 = vmatmul.f32.gmra.mxu0 %v676
      %v695 = vpop.f32.mrf.mxu0
      %v696 = vadd.f32 %v674, %v695
      %697 = vdwg.mxu0
      %698 = vmatpush.msra.mxu0 0.0
      %699 = vmatpush.msra.mxu0 0.0
      %700 = vmatpush.msra.mxu0 0.0
      %701 = vmatpush.msra.mxu0 0.0
      %702 = vmatpush.msra.mxu0 0.0
      %703 = vmatpush.msra.mxu0 0.0
      %704 = vmatpush.msra.mxu0 0.0
      %705 = vmatpush.msra.mxu0 0.0
      %706 = vmatpush.msra.mxu0 0.0
      %707 = vmatpush.msra.mxu0 0.0
      %708 = vmatpush.msra.mxu0 0.0
      %709 = vmatpush.msra.mxu0 0.0
      %710 = vmatpush.msra.mxu0 %v666
      %711 = vmatpush.msra.mxu0 %v664
      %712 = vmatpush.msra.mxu0 %v662
      %713 = vmatpush.msra.mxu0 %v660
      %714 = vmatmul.f32.gmra.mxu0 %v676
      %v715 = vpop.f32.mrf.mxu0
      %v716 = vadd.f32 %v674, %v715
      %717 = vdwg.mxu0
      %v720 = vrot.slane %v716, 7
      %vm721 = vcmask 1040384
      %v722 = vsel %vm721, %v696, %v720
      %v724 = vlaneseq
      %vm725 = vcmp.ge.s32.totalorder %v724, 0
      %vm726 = vcmp.lt.s32.totalorder %v724, 256
      %vm727 = vmand %vm725, %vm726
      %728 = vst.msk [vmem:[%s334] sm:$0x3] %vm727, %v722
      %s729 = smul.u32 2, %s22
      %p730 = scmp.lt.s32.totalorder %s729, 3
      %s731 = scalar_select %p730, %s729, 3
      %s732 = scalar_lea.vmem %s9, %s731
      // Predicated region
      $region57: #{inr_forward.1} parent=55 // pred_check
        %p733 = pneg %p234
      $region58: #{inr_forward.1} parent=55 // pred_check_branch
        %735 = sbr.rel (%p733) target = $region60
      $region59: #{inr_forward.1} parent=55 // pred_region
        %s736 = smul.u32 2, %s22
      $region60: #{inr_forward.1} parent=55 // pred_fallthru
        _
    $region56: #{inr_forward.1} parent=5 // pred_fallthru
      _
    %p737 = scmp.le.s32.totalorder 2, %s17
    // Predicated region
    $region61: #{inr_forward.1} parent=5 // pred_check
      %p738 = pneg %p737
    $region62: #{inr_forward.1} parent=5 // pred_check_branch
      %740 = sbr.rel (%p738) target = $region64
    $region63: #{inr_forward.1} parent=5 // pred_region
      %s741 = ssub.s32 %s17, 2
      // Predicated region
      $region65: #{inr_forward.1} parent=63 // pred_check
        %p742 = pneg %p240
      $region66: #{inr_forward.1} parent=63 // pred_check_branch
        %744 = sbr.rel (%p742) target = $region68
      $region67: #{inr_forward.1} parent=63 // pred_region
        %s745 = smul.u32 2, %s23
        %p746 = scmp.lt.s32.totalorder %s745, 3
        %s747 = scalar_select %p746, %s745, 3
        %s748 = scalar_lea.vmem %s9, %s747
      $region68: #{inr_forward.1} parent=63 // pred_fallthru
        _
    $region64: #{inr_forward.1} parent=5 // pred_fallthru
      _
  $region6: #{inr_forward.1} parent=0 // loop_footer
    %s21 = sadd.s32 1, %s17
  $region7: #{inr_forward.1} parent=0 // loop_footer_branch
    %16 = sbr.rel target = $region3
  $region8: #{inr_forward.1} parent=0 // loop_exit
    _

</llo_original>
